<compile_context>
chip_gen: v6e
topology: v6e:2x2x1
jax: 0.10.0
libtpu: 0.0.40
codegen_flags: <defaults>
</compile_context>

<pallas_src>
import functools

import jax
import jax.numpy as jnp
from jax.experimental import pallas as pl
from jax.experimental.pallas import tpu as pltpu


def _similarity_kernel(h_ref, u_ref, o_ref, *, H):
    # h_ref: (1, tc, H)   u_ref: (1, tq, H)   o_ref: (1, tc, tq, 3H)
    _, tc, _ = h_ref.shape
    _, tq, _ = u_ref.shape

    h = h_ref[...]                          # (1, tc, H)
    u = u_ref[...]                          # (1, tq, H)
    hb = h[:, :, None, :]                   # (1, tc, 1, H)
    ub = u[:, None, :, :]                   # (1, 1, tq, H)

    # Segment 0: h broadcast over the Q axis.
    o_ref[:, :, :, 0:H] = jnp.broadcast_to(hb, (1, tc, tq, H))
    # Segment 1: u broadcast over the C axis.
    o_ref[:, :, :, H:2 * H] = jnp.broadcast_to(ub, (1, tc, tq, H))
    # Segment 2: elementwise product (computed in the input dtype, as in torch).
    o_ref[:, :, :, 2 * H:3 * H] = hb * ub


def _physical_vmem_bytes():
    """Physical VMEM of the current chip (per TensorCore); safe fallback 64 MiB."""
    try:
        info = pltpu.get_tpu_info()
        vmem = getattr(info, "vmem_capacity_bytes", None)
        if vmem:
            return int(vmem)
    except Exception:
        pass
    return 64 << 20  # conservative: v7x per-TC VMEM; also valid on v5e/v6e


def _legal_tiles_desc(n, mult):
    """Legal block sizes for a (second-to-last) dim of extent n, descending.

    A block size is legal if it divides n and is a multiple of `mult`
    (dtype-aware sublane multiple), or if it equals the full extent n.
    """
    ds = [d for d in range(mult, n + 1, mult) if n % d == 0]
    return sorted(set(ds + [n]), reverse=True)


def _choose_tiles(B, C, Q, H, itemsize, out_budget_bytes, want_min_blocks=4):
    """Pick (tc, tq) for the (1, tc, tq, 3H) output tile.

    Policy (store-bound kernel):
      1. Keep tq (contiguous output row length) as large as possible, ideally Q.
      2. When over budget, shrink tc FIRST; only shrink tq if tc is already at
         its minimum legal value.
      3. After fitting the budget, shrink tc (only) further if needed so the
         grid has at least `want_min_blocks` blocks (v7x megacore balance).
    """
    m = max(8, 32 // max(itemsize, 1))       # dtype-aware sublane multiple

    def dbuf_out_bytes(tc, tq):
        return 2 * tc * tq * 3 * H * itemsize   # x2 for double-buffering

    tc_opts = _legal_tiles_desc(C, m)        # descending, includes full extent
    tq_opts = _legal_tiles_desc(Q, m)

    tc, tq = tc_opts[-1], tq_opts[-1]        # fallback: smallest legal tile
    found = False
    for cand_tq in tq_opts:                  # tq_opts[0] == Q (largest first)
        for cand_tc in tc_opts:              # largest tc that fits for this tq
            if dbuf_out_bytes(cand_tc, cand_tq) <= out_budget_bytes:
                tc, tq = cand_tc, cand_tq
                found = True
                break
        if found:
            break

    # Megacore balance: prefer >= want_min_blocks grid blocks (2 TCs on v7x).
    smaller_tc = [d for d in tc_opts if d < tc]
    while B * (C // tc) * (Q // tq) < want_min_blocks and smaller_tc:
        tc = smaller_tc.pop(0)

    return tc, tq


def similarity_model(h, u):
    """h: (B, C, H), u: (B, Q, H) -> (B, C, Q, 3H)."""
    B, C, H = h.shape
    B2, Q, H2 = u.shape
    assert B == B2 and H == H2

    itemsize = jnp.dtype(h.dtype).itemsize
    phys_vmem = _physical_vmem_bytes()

    # ~0.5x physical VMEM for the double-buffered output tile:
    #   v5e/v6e (128 MiB) -> 64 MiB budget; v7x (64 MiB) -> 32 MiB budget.
    out_budget = phys_vmem // 2
    tc, tq = _choose_tiles(B, C, Q, H, itemsize, out_budget)
    assert C % tc == 0 and Q % tq == 0
    grid = (B, C // tc, Q // tq)

    out_shape = jax.ShapeDtypeStruct((B, C, Q, 3 * H), h.dtype)

    # Explicit VMEM limit: double-buffered output + input tiles with ~1.5x
    # headroom, capped at ~0.75x physical VMEM (96 MiB on v5e/v6e, 48 MiB on
    # v7x), and never below 16 MiB (v5e's default scoped limit) or the actual
    # double-buffered footprint.
    out_tile_bytes = tc * tq * 3 * H * itemsize
    h_tile_bytes = tc * H * itemsize
    u_tile_bytes = tq * H * itemsize
    needed = 2 * (out_tile_bytes + h_tile_bytes + u_tile_bytes)
    vmem_limit = max(needed * 3 // 2, 16 << 20)
    vmem_limit = min(vmem_limit, phys_vmem * 3 // 4)
    vmem_limit = int(max(vmem_limit, needed))

    kernel = functools.partial(_similarity_kernel, H=H)

    return pl.pallas_call(
        kernel,
        out_shape=out_shape,
        grid_spec=pltpu.PrefetchScalarGridSpec(
            num_scalar_prefetch=0,
            grid=grid,
            in_specs=[
                # h tile depends only on (b, ci): stays resident across the
                # inner Q loop instead of being re-DMA'd per qi step.
                pl.BlockSpec((1, tc, H), lambda b, ci, qi: (b, ci, 0)),
                # u tile depends only on (b, qi). With the preferred tq == Q
                # there is a single u tile per batch, i.e. it is fully resident.
                pl.BlockSpec((1, tq, H), lambda b, ci, qi: (b, qi, 0)),
            ],
            out_specs=pl.BlockSpec(
                (1, tc, tq, 3 * H), lambda b, ci, qi: (b, ci, qi, 0)
            ),
        ),
        compiler_params=pltpu.CompilerParams(
            dimension_semantics=("parallel", "parallel", "parallel"),
            vmem_limit_bytes=vmem_limit,
        ),
    )(h, u)


def _reference(h, u):
    B, C, H = h.shape
    Q = u.shape[1]
    h2 = jnp.broadcast_to(h[:, :, None, :], (B, C, Q, H))
    u2 = jnp.broadcast_to(u[:, None, :, :], (B, C, Q, H))
    return jnp.concatenate([h2, u2, h2 * u2], axis=-1)


if __name__ == "__main__":
    key = jax.random.PRNGKey(0)
    kh, ku = jax.random.split(key)

    # Small but lane-friendly shapes: H = 128 so each stored segment is a full
    # multiple of the 128-lane vreg width (unmasked stores).
    B, C, Q, hidden = 2, 16, 8, 128
    h = jax.random.normal(kh, (B, C, hidden), dtype=jnp.float32)
    u = jax.random.normal(ku, (B, Q, hidden), dtype=jnp.float32)

    out = similarity_model(h, u)
    out = jax.block_until_ready(out)

    ref = _reference(h, u)
    assert out.shape == (B, C, Q, 3 * hidden), out.shape
    assert jnp.allclose(out, ref, atol=1e-6, rtol=1e-6), "mismatch vs reference"

    print("KERNEL_OK")
</pallas_src>

<mosaic_0001>
module attributes {stable_mosaic.version = 11 : i64} {
  func.func @_similarity_kernel(%arg0: i32, %arg1: i32, %arg2: i32, %arg3: memref<1x8x128xf32, #tpu.memory_space<vmem>>, %arg4: memref<1x8x128xf32, #tpu.memory_space<vmem>>, %arg5: memref<1x8x8x384xf32, #tpu.memory_space<vmem>>) attributes {dimension_semantics = [#tpu.dimension_semantics<parallel>, #tpu.dimension_semantics<parallel>, #tpu.dimension_semantics<parallel>], iteration_bounds = array<i64: 2, 2, 1>, scalar_prefetch = 0 : i64, scratch_operands = 0 : i64, tpu.core_type = #tpu.core_type<tc>, window_params = [{transform_indices = @transform_0, window_bounds = array<i64: 1, 8, 128>}, {transform_indices = @transform_1, window_bounds = array<i64: 1, 8, 128>}, {transform_indices = @transform_2, window_bounds = array<i64: 1, 8, 8, 384>}]} {
    %c0 = arith.constant 0 : index
    %c0_0 = arith.constant 0 : index
    %c0_1 = arith.constant 0 : index
    %0 = vector.load %arg3[%c0, %c0_0, %c0_1] : memref<1x8x128xf32, #tpu.memory_space<vmem>>, vector<1x8x128xf32>
    %c0_2 = arith.constant 0 : index
    %c0_3 = arith.constant 0 : index
    %c0_4 = arith.constant 0 : index
    %1 = vector.load %arg4[%c0_2, %c0_3, %c0_4] : memref<1x8x128xf32, #tpu.memory_space<vmem>>, vector<1x8x128xf32>
    %2 = vector.shape_cast %0 : vector<1x8x128xf32> to vector<1x8x1x128xf32>
    %3 = vector.shape_cast %1 : vector<1x8x128xf32> to vector<1x1x8x128xf32>
    %4 = vector.shape_cast %2 : vector<1x8x1x128xf32> to vector<1x8x1x128xf32>
    %5 = vector.broadcast %4 : vector<1x8x1x128xf32> to vector<1x8x8x128xf32>
    %c0_5 = arith.constant 0 : index
    %c0_6 = arith.constant 0 : index
    %c0_7 = arith.constant 0 : index
    %c0_8 = arith.constant 0 : index
    %6 = vector.load %arg5[%c0_5, %c0_6, %c0_7, %c0_8] : memref<1x8x8x384xf32, #tpu.memory_space<vmem>>, vector<1x8x8x128xf32>
    tpu.vector_store %arg5[%c0_5, %c0_6, %c0_7, %c0_8], %5 {strides = array<i32>} : memref<1x8x8x384xf32, #tpu.memory_space<vmem>>, vector<1x8x8x128xf32>,
    %7 = vector.shape_cast %3 : vector<1x1x8x128xf32> to vector<1x1x8x128xf32>
    %8 = vector.broadcast %7 : vector<1x1x8x128xf32> to vector<1x8x8x128xf32>
    %c0_9 = arith.constant 0 : index
    %c0_10 = arith.constant 0 : index
    %c0_11 = arith.constant 0 : index
    %c128 = arith.constant 128 : index
    %9 = vector.load %arg5[%c0_9, %c0_10, %c0_11, %c128] : memref<1x8x8x384xf32, #tpu.memory_space<vmem>>, vector<1x8x8x128xf32>
    tpu.vector_store %arg5[%c0_9, %c0_10, %c0_11, %c128], %8 {strides = array<i32>} : memref<1x8x8x384xf32, #tpu.memory_space<vmem>>, vector<1x8x8x128xf32>,
    %10 = vector.broadcast %2 : vector<1x8x1x128xf32> to vector<1x8x8x128xf32>
    %11 = vector.broadcast %3 : vector<1x1x8x128xf32> to vector<1x8x8x128xf32>
    %12 = arith.mulf %10, %11 : vector<1x8x8x128xf32>
    %c0_12 = arith.constant 0 : index
    %c0_13 = arith.constant 0 : index
    %c0_14 = arith.constant 0 : index
    %c256 = arith.constant 256 : index
    %13 = vector.load %arg5[%c0_12, %c0_13, %c0_14, %c256] : memref<1x8x8x384xf32, #tpu.memory_space<vmem>>, vector<1x8x8x128xf32>
    tpu.vector_store %arg5[%c0_12, %c0_13, %c0_14, %c256], %12 {strides = array<i32>} : memref<1x8x8x384xf32, #tpu.memory_space<vmem>>, vector<1x8x8x128xf32>,
    return
  }
  func.func @transform_0(%arg0: i32, %arg1: i32, %arg2: i32) -> (i32, i32, i32) {
    %c0_i32 = arith.constant 0 : i32
    %c0_i32_0 = arith.constant 0 : i32
    return %arg0, %arg1, %c0_i32 : i32, i32, i32
  }
  func.func @transform_1(%arg0: i32, %arg1: i32, %arg2: i32) -> (i32, i32, i32) {
    %c0_i32 = arith.constant 0 : i32
    %c0_i32_0 = arith.constant 0 : i32
    return %arg0, %arg2, %c0_i32 : i32, i32, i32
  }
  func.func @transform_2(%arg0: i32, %arg1: i32, %arg2: i32) -> (i32, i32, i32, i32) {
    %c0_i32 = arith.constant 0 : i32
    %c0_i32_0 = arith.constant 0 : i32
    return %arg0, %arg1, %arg2, %c0_i32 : i32, i32, i32, i32
  }
}

</mosaic_0001>

<llo_original>
// kernel: tpu_custom_call.1
$region0: #{tpu_custom_call.1}
  #allocation0 [shape = 'u32[]', space=smem, size = 0x4, offset = 0x4, fixed_abs, tag = 'smem constant byte address 0x4 - core index']
  #allocation1 [shape = 'u32[144,128]{1,0:T(1,128)}', space=vmem, size = 0x12000, scoped, tag = 'internal scratch']
  %s0 = inlined_call_operand.hbm [shape: f32[2,16,128], index: 0, kind: input, shape index: {}]
  %s1 = inlined_call_operand.hbm [shape: f32[2,8,128], index: 1, kind: input, shape index: {}]
  %s2 = inlined_call_operand.hbm [shape: f32[2,16,8,384], index: 2, kind: output, shape index: {}]
  %s3 = sld [smem:[#allocation0]]
  $region49: #{tpu_custom_call.1} parent=0
    _
  %s5 = ssub.s32 1, %s3
  %s6 = scalar_select 0, %s5, %s3
  $region1: #{tpu_custom_call.1} parent=0
    #allocation2 [shape = 'u8[8192]{0}', space=vmem, size = 0x2000, scoped, tag = 'input window, operand 0']
    #allocation3 [shape = 's32[2]{0}', space=sflag, size = 0x8, scoped, tag = 'scoped memory for tpu_custom_call.1']
    #allocation4 [shape = 's32[2]{0}', space=sflag, size = 0x8, scoped, tag = 'scoped memory for tpu_custom_call.1']
    #allocation5 [shape = 'u8[8192]{0}', space=vmem, size = 0x2000, scoped, tag = 'input window, operand 1']
    #allocation6 [shape = 's32[2]{0}', space=sflag, size = 0x8, scoped, tag = 'scoped memory for tpu_custom_call.1']
    #allocation7 [shape = 'u8[196608]{0}', space=vmem, size = 0x30000, scoped, tag = 'output window, operand 0']
    %7 = vsyncpa [#allocation3], 0
    %s8 = scalar_lea.sflag [#allocation3], 1
    %9 = vsyncpa %s8, 0
    %10 = vsyncpa [#allocation6], 0
    %s11 = scalar_lea.sflag [#allocation6], 1
    %12 = vsyncpa %s11, 0
    %13 = vsyncpa [#allocation4], 0
    %s14 = scalar_lea.sflag [#allocation4], 1
    %15 = vsyncpa %s14, 0
    loop: start=0, step=1, limit=6
    $region2: #{tpu_custom_call.1} parent=1 // loop_pre_header
      _
    $region3: #{tpu_custom_call.1} parent=1 // loop_header
      %s17 = sphi 0, %s21
      %p18 = scmp.ge.s32.totalorder %s17, 6
      %s24 = sphi 0, %s43
      %s25 = sphi 0, %s39
      %s26 = sphi 0, %s35
      %s27 = sphi 0, %s24
      %s28 = sphi 0, %s25
      %s29 = sphi 0, %s26
      %s30 = sphi 0, %s27
      %s31 = sphi 0, %s28
      %s32 = sphi 0, %s29
      %s48 = sphi 0, %s50
      %s51 = sphi 0, %s48
      %s52 = sphi 0, %s51
      %s68 = sphi 0, %s52
      %s76 = sphi 0, %s78
      %s79 = sphi 0, %s76
      %s80 = sphi 0, %s79
      %s96 = sphi 0, %s80
      %s106 = sphi 0, %s108
      %s109 = sphi 0, %s106
      %s110 = sphi 0, %s109
      %s126 = sphi 0, %s110
    $region4: #{tpu_custom_call.1} parent=1 // loop_header_branch
      %20 = sbr.rel (%p18) target = $region8
    $region5: #{tpu_custom_call.1} parent=1 // loop_body
      %s22 = ssub.s32 %s17, 1
      %s23 = ssub.s32 %s17, 2
      %s33 = sadd.s32 1, %s26
      %p34 = scmp.ge.s32.totalorder %s33, 1
      %s35 = scalar_select %p34, 0, %s33
      %s36 = sadd.s32 1, %s25
      %s37 = scalar_select %p34, %s36, %s25
      %p38 = scmp.ge.s32.totalorder %s37, 2
      %s39 = scalar_select %p38, 0, %s37
      %s40 = sadd.s32 1, %s24
      %s41 = scalar_select %p38, %s40, %s24
      %p42 = scmp.ge.s32.totalorder %s41, 2
      %s43 = scalar_select %p42, 0, %s41
      %s44 = ssub.s32 %s24, %s43
      %s45 = ssub.s32 %s25, %s39
      %s46 = sor.u32 %s44, %s45
      %p47 = scmp.eq.s32.totalorder %s46, 0
      %s49 = sadd.s32 %s48, 1
      %s50 = scalar_select %p47, %s48, %s49
      %p53 = pneg %p47
      %p54 = scmp.eq.s32.totalorder %s17, 3
      %p55 = por %p53, %p54
      %p56 = scmp.ne.s32.totalorder %s48, %s51
      %p57 = scmp.eq.s32.totalorder %s17, 0
      %p58 = por %p56, %p57
      %p59 = scmp.ne.s32.totalorder %s48, %s51
      %p60 = scmp.eq.s32.totalorder %s22, 3
      %p61 = por %p59, %p60
      %p62 = scmp.ne.s32.totalorder %s51, %s52
      %p63 = scmp.eq.s32.totalorder %s22, 0
      %p64 = por %p62, %p63
      %p65 = scmp.ne.s32.totalorder %s51, %s52
      %p66 = scmp.eq.s32.totalorder %s23, 3
      %p67 = por %p65, %p66
      %p69 = scmp.ne.s32.totalorder %s52, %s68
      %p70 = scmp.eq.s32.totalorder %s23, 0
      %p71 = por %p69, %p70
      %s72 = ssub.s32 %s24, %s43
      %s73 = ssub.s32 %s26, %s35
      %s74 = sor.u32 %s72, %s73
      %p75 = scmp.eq.s32.totalorder %s74, 0
      %s77 = sadd.s32 %s76, 1
      %s78 = scalar_select %p75, %s76, %s77
      %p81 = pneg %p75
      %p82 = scmp.eq.s32.totalorder %s17, 3
      %p83 = por %p81, %p82
      %p84 = scmp.ne.s32.totalorder %s76, %s79
      %p85 = scmp.eq.s32.totalorder %s17, 0
      %p86 = por %p84, %p85
      %p87 = scmp.ne.s32.totalorder %s76, %s79
      %p88 = scmp.eq.s32.totalorder %s22, 3
      %p89 = por %p87, %p88
      %p90 = scmp.ne.s32.totalorder %s79, %s80
      %p91 = scmp.eq.s32.totalorder %s22, 0
      %p92 = por %p90, %p91
      %p93 = scmp.ne.s32.totalorder %s79, %s80
      %p94 = scmp.eq.s32.totalorder %s23, 3
      %p95 = por %p93, %p94
      %p97 = scmp.ne.s32.totalorder %s80, %s96
      %p98 = scmp.eq.s32.totalorder %s23, 0
      %p99 = por %p97, %p98
      %s100 = ssub.s32 %s24, %s43
      %s101 = ssub.s32 %s25, %s39
      %s102 = sor.u32 %s100, %s101
      %s103 = ssub.s32 %s26, %s35
      %s104 = sor.u32 %s102, %s103
      %p105 = scmp.eq.s32.totalorder %s104, 0
      %s107 = sadd.s32 %s106, 1
      %s108 = scalar_select %p105, %s106, %s107
      %p111 = pneg %p105
      %p112 = scmp.eq.s32.totalorder %s17, 3
      %p113 = por %p111, %p112
      %p114 = scmp.ne.s32.totalorder %s106, %s109
      %p115 = scmp.eq.s32.totalorder %s17, 0
      %p116 = por %p114, %p115
      %p117 = scmp.ne.s32.totalorder %s106, %s109
      %p118 = scmp.eq.s32.totalorder %s22, 3
      %p119 = por %p117, %p118
      %p120 = scmp.ne.s32.totalorder %s109, %s110
      %p121 = scmp.eq.s32.totalorder %s22, 0
      %p122 = por %p120, %p121
      %p123 = scmp.ne.s32.totalorder %s109, %s110
      %p124 = scmp.eq.s32.totalorder %s23, 3
      %p125 = por %p123, %p124
      %p127 = scmp.ne.s32.totalorder %s110, %s126
      %p128 = scmp.eq.s32.totalorder %s23, 0
      %p129 = por %p127, %p128
      %p130 = scmp.le.s32.totalorder 1, %s17
      %p131 = scmp.lt.s32.totalorder %s17, 5
      %p132 = pnand %p130, %p131
      %p133 = pneg %p132
      // Predicated region
      $region9: #{tpu_custom_call.1} parent=5 // pred_check
        _
      $region10: #{tpu_custom_call.1} parent=5 // pred_check_branch
        %135 = sbr.rel (%p132) target = $region12
      $region11: #{tpu_custom_call.1} parent=5 // pred_region
        %s136 = ssub.s32 %s17, 1
      $region12: #{tpu_custom_call.1} parent=5 // pred_fallthru
        _
      %p137 = scmp.lt.s32.totalorder %s17, 4
      // Predicated region
      $region13: #{tpu_custom_call.1} parent=5 // pred_check
        %p138 = pneg %p137
      $region14: #{tpu_custom_call.1} parent=5 // pred_check_branch
        %140 = sbr.rel (%p138) target = $region16
      $region15: #{tpu_custom_call.1} parent=5 // pred_region
        // Predicated region
        $region17: #{tpu_custom_call.1} parent=15 // pred_check
          %p141 = pneg %p58
        $region18: #{tpu_custom_call.1} parent=15 // pred_check_branch
          %143 = sbr.rel (%p141) target = $region20
        $region19: #{tpu_custom_call.1} parent=15 // pred_region
          %s144 = sand.u32 %s48, 1
          %s145 = scalar_lea.sflag [#allocation3], %s144
          %s146 = sand.u32 %s48, 1
          %s147 = smul.addr %s146, 8
          %s148 = scalar_lea.vmem [#allocation2], %s147
          %s150 = ssub.s32 128, 128
          %151 = vsyncadd %s145, %s150
          %s152 = smul.addr %s24, 2
          %s153 = sadd.s32 %s25, %s152
          %s154 = smul.addr %s153, 128
          %s155 = scalar_lea.hbm %s0, %s154
          %s157 = sshll.u32 %s148, 4
          %s158 = int_to_ptr.vmem [resolvable:$true] %s157
          %160 = dma.hbm_to_vmem [thread:$0]  %s155, 128, %s158, %s145
        $region20: #{tpu_custom_call.1} parent=15 // pred_fallthru
          _
        // Predicated region
        $region21: #{tpu_custom_call.1} parent=15 // pred_check
          %p161 = pneg %p86
        $region22: #{tpu_custom_call.1} parent=15 // pred_check_branch
          %163 = sbr.rel (%p161) target = $region24
        $region23: #{tpu_custom_call.1} parent=15 // pred_region
          %s164 = sand.u32 %s76, 1
          %s165 = scalar_lea.sflag [#allocation6], %s164
          %s166 = sand.u32 %s76, 1
          %s167 = smul.addr %s166, 8
          %s168 = scalar_lea.vmem [#allocation5], %s167
          %s170 = ssub.s32 128, 128
          %171 = vsyncadd %s165, %s170
          %s172 = sadd.s32 %s26, %s24
          %s173 = smul.addr %s172, 128
          %s174 = scalar_lea.hbm %s1, %s173
          %s176 = sshll.u32 %s168, 4
          %s177 = int_to_ptr.vmem [resolvable:$true] %s176
          %179 = dma.hbm_to_vmem [thread:$0]  %s174, 128, %s177, %s165
        $region24: #{tpu_custom_call.1} parent=15 // pred_fallthru
          _
      $region16: #{tpu_custom_call.1} parent=5 // pred_fallthru
        _
      %p180 = scmp.le.s32.totalorder 1, %s17
      %p181 = scmp.lt.s32.totalorder %s17, 5
      %p182 = pnand %p180, %p181
      %p183 = pneg %p182
      // Predicated region
      $region25: #{tpu_custom_call.1} parent=5 // pred_check
        _
      $region26: #{tpu_custom_call.1} parent=5 // pred_check_branch
        %185 = sbr.rel (%p182) target = $region28
      $region27: #{tpu_custom_call.1} parent=5 // pred_region
        %s186 = ssub.s32 %s17, 1
        %s187 = sand.u32 %s51, 1
        %s188 = scalar_lea.sflag [#allocation3], %s187
        %s189 = sand.u32 %s51, 1
        %s190 = smul.addr %s189, 8
        %s191 = scalar_lea.vmem [#allocation2], %s190
        // Predicated region
        $region29: #{tpu_custom_call.1} parent=27 // pred_check
          %p192 = pneg %p64
        $region30: #{tpu_custom_call.1} parent=27 // pred_check_branch
          %194 = sbr.rel (%p192) target = $region32
        $region31: #{tpu_custom_call.1} parent=27 // pred_region
          %195 = dma.done %s188, 128
        $region32: #{tpu_custom_call.1} parent=27 // pred_fallthru
          _
        %s196 = sand.u32 %s79, 1
        %s197 = scalar_lea.sflag [#allocation6], %s196
        %s198 = sand.u32 %s79, 1
        %s199 = smul.addr %s198, 8
        %s200 = scalar_lea.vmem [#allocation5], %s199
        // Predicated region
        $region33: #{tpu_custom_call.1} parent=27 // pred_check
          %p201 = pneg %p92
        $region34: #{tpu_custom_call.1} parent=27 // pred_check_branch
          %203 = sbr.rel (%p201) target = $region36
        $region35: #{tpu_custom_call.1} parent=27 // pred_region
          %204 = dma.done %s197, 128
        $region36: #{tpu_custom_call.1} parent=27 // pred_fallthru
          _
        %s205 = sand.u32 %s51, 1
        %s206 = scalar_lea.sflag [#allocation3], %s205
        %s207 = sand.u32 %s51, 1
        %s208 = smul.addr %s207, 8
        %s209 = scalar_lea.vmem [#allocation2], %s208
        %p210 = pneg %p64
        %p211 = pneg %p61
        %s212 = sand.u32 %s79, 1
        %s213 = scalar_lea.sflag [#allocation6], %s212
        %s214 = sand.u32 %s79, 1
        %s215 = smul.addr %s214, 8
        %s216 = scalar_lea.vmem [#allocation5], %s215
        %p217 = pneg %p92
        %p218 = pneg %p89
        %p219 = pneg %p122
        %p220 = pneg %p119
        %s221 = sand.u32 %s109, 1
        %s222 = scalar_lea.sflag [#allocation4], %s221
        %s223 = sand.u32 %s109, 1
        %s224 = smul.addr %s223, 192
        %s225 = scalar_lea.vmem [#allocation7], %s224
        %s226 = smul.u32 8, %s28
        %v227 = vld [vmem:[%s191] sm:$0xff]
        %v228 = vld [vmem:[%s200] sm:$0xff]
        %v230 = vcombine.high %v227, %v227
        %v232 = vunpack.c.l.s4 1966171168
        %v233 = vunpack.c.0.s8 %v232
        %v234 = vlaneseq
        %v235 = vshrl.u32 %v234, 7
        %v236 = vsub.s32 %v233, %v235
        %v237 = vrot.slane %v227, %v236
        %v239 = vunpack.c.l.s4 1966171168
        %v240 = vunpack.c.0.s8 %v239
        %v241 = vlaneseq
        %v242 = vshrl.u32 %v241, 7
        %v243 = vsub.s32 %v240, %v242
        %v244 = vrot.slane %v230, %v243
        %v245 = vcombine.high %v237, %v237
        %v246 = vcombine.high %v244, %v244
        %v248 = vunpack.c.l.s4 1966171168
        %v249 = vunpack.c.0.s8 %v248
        %v250 = vlaneseq
        %v251 = vshrl.u32 %v250, 7
        %v252 = vsub.s32 %v249, %v251
        %v253 = vrot.slane %v237, %v252
        %v255 = vunpack.c.l.s4 1966171168
        %v256 = vunpack.c.0.s8 %v255
        %v257 = vlaneseq
        %v258 = vshrl.u32 %v257, 7
        %v259 = vsub.s32 %v256, %v258
        %v260 = vrot.slane %v244, %v259
        %v262 = vunpack.c.l.s4 1966171168
        %v263 = vunpack.c.0.s8 %v262
        %v264 = vlaneseq
        %v265 = vshrl.u32 %v264, 7
        %v266 = vsub.s32 %v263, %v265
        %v267 = vrot.slane %v245, %v266
        %v269 = vunpack.c.l.s4 1966171168
        %v270 = vunpack.c.0.s8 %v269
        %v271 = vlaneseq
        %v272 = vshrl.u32 %v271, 7
        %v273 = vsub.s32 %v270, %v272
        %v274 = vrot.slane %v246, %v273
        %v275 = vcombine.high %v253, %v253
        %v276 = vcombine.high %v260, %v260
        %v277 = vcombine.high %v267, %v267
        %v278 = vcombine.high %v274, %v274
        %v279 = vlaneseq
        %v280 = vshrl.u32 %v279, 7
        %v281 = vsub.s32 0, %v280
        %v282 = vrot.slane %v253, %v281
        %v283 = vlaneseq
        %v284 = vshrl.u32 %v283, 7
        %v285 = vsub.s32 0, %v284
        %v286 = vrot.slane %v267, %v285
        %v287 = vlaneseq
        %v288 = vshrl.u32 %v287, 7
        %v289 = vsub.s32 0, %v288
        %v290 = vrot.slane %v275, %v289
        %v291 = vlaneseq
        %v292 = vshrl.u32 %v291, 7
        %v293 = vsub.s32 0, %v292
        %v294 = vrot.slane %v277, %v293
        %v295 = vlaneseq
        %v296 = vshrl.u32 %v295, 7
        %v297 = vsub.s32 0, %v296
        %v298 = vrot.slane %v260, %v297
        %v299 = vlaneseq
        %v300 = vshrl.u32 %v299, 7
        %v301 = vsub.s32 0, %v300
        %v302 = vrot.slane %v274, %v301
        %v303 = vlaneseq
        %v304 = vshrl.u32 %v303, 7
        %v305 = vsub.s32 0, %v304
        %v306 = vrot.slane %v276, %v305
        %v307 = vlaneseq
        %v308 = vshrl.u32 %v307, 7
        %v309 = vsub.s32 0, %v308
        %v310 = vrot.slane %v278, %v309
        %319 = vst [vmem:[%s225] sm:$0xff] %v282
        %320 = vst [vmem:[%s225 + $0x18] sm:$0xff] %v286
        %321 = vst [vmem:[%s225 + $0x30] sm:$0xff] %v290
        %322 = vst [vmem:[%s225 + $0x48] sm:$0xff] %v294
        %323 = vst [vmem:[%s225 + $0x60] sm:$0xff] %v298
        %324 = vst [vmem:[%s225 + $0x78] sm:$0xff] %v302
        %325 = vst [vmem:[%s225 + $0x90] sm:$0xff] %v306
        %326 = vst [vmem:[%s225 + $0xa8] sm:$0xff] %v310
        %327 = vst [vmem:[%s225 + $0x8] sm:$0xff] %v228
        %328 = vst [vmem:[%s225 + $0x20] sm:$0xff] %v228
        %329 = vst [vmem:[%s225 + $0x38] sm:$0xff] %v228
        %330 = vst [vmem:[%s225 + $0x50] sm:$0xff] %v228
        %331 = vst [vmem:[%s225 + $0x68] sm:$0xff] %v228
        %332 = vst [vmem:[%s225 + $0x80] sm:$0xff] %v228
        %333 = vst [vmem:[%s225 + $0x98] sm:$0xff] %v228
        %334 = vst [vmem:[%s225 + $0xb0] sm:$0xff] %v228
        %v335 = vmul.f32 %v282, %v228
        %v336 = vmul.f32 %v286, %v228
        %v337 = vmul.f32 %v290, %v228
        %v338 = vmul.f32 %v294, %v228
        %v339 = vmul.f32 %v298, %v228
        %v340 = vmul.f32 %v302, %v228
        %v341 = vmul.f32 %v306, %v228
        %v342 = vmul.f32 %v310, %v228
        %343 = vst [vmem:[%s225 + $0x10] sm:$0xff] %v335
        %344 = vst [vmem:[%s225 + $0x28] sm:$0xff] %v336
        %345 = vst [vmem:[%s225 + $0x40] sm:$0xff] %v337
        %346 = vst [vmem:[%s225 + $0x58] sm:$0xff] %v338
        %347 = vst [vmem:[%s225 + $0x70] sm:$0xff] %v339
        %348 = vst [vmem:[%s225 + $0x88] sm:$0xff] %v340
        %349 = vst [vmem:[%s225 + $0xa0] sm:$0xff] %v341
        %350 = vst [vmem:[%s225 + $0xb8] sm:$0xff] %v342
        %s351 = sand.u32 %s109, 1
        %s352 = scalar_lea.sflag [#allocation4], %s351
        %s353 = sand.u32 %s109, 1
        %s354 = smul.addr %s353, 192
        %s355 = scalar_lea.vmem [#allocation7], %s354
        // Predicated region
        $region37: #{tpu_custom_call.1} parent=27 // pred_check
          %p356 = pneg %p119
        $region38: #{tpu_custom_call.1} parent=27 // pred_check_branch
          %358 = sbr.rel (%p356) target = $region40
        $region39: #{tpu_custom_call.1} parent=27 // pred_region
          %s359 = smul.u32 8, %s28
          %s361 = ssub.s32 3072, 3072
          %362 = vsyncadd %s352, %s361
          %s363 = smul.addr %s29, 3
          %s364 = smul.addr %s359, 3
          %s365 = sadd.s32 %s363, %s364
          %s366 = smul.addr %s27, 48
          %s367 = sadd.s32 %s365, %s366
          %s368 = smul.addr %s367, 128
          %s369 = scalar_lea.hbm %s2, %s368
          %s370 = sshll.u32 %s355, 4
          %s371 = int_to_ptr.vmem [resolvable:$true] %s370
          %376 = dma.vmem_to_hbm [thread:$0]  %s371, 3072, %s369, %s352, 384, 384, 24
        $region40: #{tpu_custom_call.1} parent=27 // pred_fallthru
          _
      $region28: #{tpu_custom_call.1} parent=5 // pred_fallthru
        _
      %p377 = scmp.le.s32.totalorder 2, %s17
      // Predicated region
      $region41: #{tpu_custom_call.1} parent=5 // pred_check
        %p378 = pneg %p377
      $region42: #{tpu_custom_call.1} parent=5 // pred_check_branch
        %380 = sbr.rel (%p378) target = $region44
      $region43: #{tpu_custom_call.1} parent=5 // pred_region
        %s381 = ssub.s32 %s17, 2
        // Predicated region
        $region45: #{tpu_custom_call.1} parent=43 // pred_check
          %p382 = pneg %p125
        $region46: #{tpu_custom_call.1} parent=43 // pred_check_branch
          %384 = sbr.rel (%p382) target = $region48
        $region47: #{tpu_custom_call.1} parent=43 // pred_region
          %s385 = sand.u32 %s110, 1
          %s386 = scalar_lea.sflag [#allocation4], %s385
          %s387 = sand.u32 %s110, 1
          %s388 = smul.addr %s387, 192
          %s389 = scalar_lea.vmem [#allocation7], %s388
          %390 = dma.done %s386, 3072
        $region48: #{tpu_custom_call.1} parent=43 // pred_fallthru
          _
      $region44: #{tpu_custom_call.1} parent=5 // pred_fallthru
        _
    $region6: #{tpu_custom_call.1} parent=1 // loop_footer
      %s21 = sadd.s32 1, %s17
    $region7: #{tpu_custom_call.1} parent=1 // loop_footer_branch
      %16 = sbr.rel target = $region3
    $region8: #{tpu_custom_call.1} parent=1 // loop_exit
      _
    %391 = vsyncpa [#allocation3], 1
    %s392 = scalar_lea.sflag [#allocation3], 1
    %393 = vsyncpa %s392, 1
    %394 = vsyncpa [#allocation6], 1
    %s395 = scalar_lea.sflag [#allocation6], 1
    %396 = vsyncpa %s395, 1
    %397 = vsyncpa [#allocation4], 1
    %s398 = scalar_lea.sflag [#allocation4], 1
    %399 = vsyncpa %s398, 1

</llo_original>
